<compile_context>
chip_gen: v6e
topology: v6e:2x2x1
jax: 0.10.0
libtpu: 0.0.40
codegen_flags: <defaults>
</compile_context>

<pallas_src>
import numpy as np
import jax
import jax.numpy as jnp
from jax import lax
from jax.experimental import pallas as pl
from jax.experimental.pallas import tpu as pltpu

# ---------------- static config ----------------
KERNEL_SIZE = 3
CARDINALITY = 1          # TODO(synk): cardinality > 1 (grouped conv / ResNeXt) not implemented.
STRIDE = 2
FIRST_BLOCK = False
EXPANSION = 4
SE_REDUCTION = 4
BN_EPS = 1e-5

N = 16                   # total batch
C_IN = 16
C_MID = 8                       # `channels`
C_OUT = C_MID * EXPANSION       # 32
C_SE = C_OUT // SE_REDUCTION    # 8
L = 32
PAD = KERNEL_SIZE - STRIDE      # 1
PAD_LEFT = PAD // 2             # 0
PAD_RIGHT = PAD - PAD_LEFT      # 1
L_OUT = (L + PAD - KERNEL_SIZE) // STRIDE + 1   # 16
L_SC = L // STRIDE                              # 16 (MaxPool1d(stride))
assert L_OUT == L_SC
assert PAD_LEFT == 0            # tap indexing below assumes left pad 0 (k=3, stride=2 case)

# Packed params-slab row layout (all slice starts multiples of 8).
R_W1 = 0                        # conv1, BN2-scale folded        [C_MID, C_IN]
R_W2 = 8                        # conv2 im2col, BN3-scale folded [C_MID, 3*C_MID]
R_W3 = 16                       # conv3                          [C_OUT, C_MID]
R_SE1 = 48                      # SE fc1 (x 1/L_OUT)             [C_SE,  C_OUT]
R_SE2 = 56                      # SE fc2                         [C_OUT, C_SE]
R_SC = 88                       # shortcut conv                  [C_OUT, C_IN]
R_BN1S = 120                    # BN1 scale column               [C_IN, 1]
R_BN1B = 136                    # BN1 bias column                [C_IN, 1]
R_BN2B = 152                    # BN2 bias column                [C_MID, 1]
R_BN3B = 160                    # BN3 bias column                [C_MID, 1]
R_TAP = 168                     # conv2 k=2 zero-pad mask        [1, LQ]
R_SEPB = 176                    # SE sample-selector             [B, LQ]


# ---------------- Pallas kernel ----------------
def make_kernel(b_per_step, lq, first_block):
    def kernel(x_ref, p_ref, o_ref):
        # x_ref: [C_IN, 2*LQ].  Lanes [0:LQ]   = stride phase 0 (positions 2*lo),
        #                       lanes [LQ:2LQ] = stride phase 1 (positions 2*lo+1),
        # lane index within a phase: m = s*L_OUT + lo  (sample s, output pos lo).
        x2 = x_ref[...]                                              # [C_IN, 2*LQ]

        bn1_s = p_ref[R_BN1S:R_BN1S + C_IN, 0:1]
        bn1_b = p_ref[R_BN1B:R_BN1B + C_IN, 0:1]
        bn2_b = p_ref[R_BN2B:R_BN2B + C_MID, 0:1]
        bn3_b = p_ref[R_BN3B:R_BN3B + C_MID, 0:1]

        # BN1 + ReLU (inference BN folded to scale/bias), both stride phases at once.
        xb = jnp.maximum(x2 * bn1_s + bn1_b, 0.0)                    # [C_IN, 2*LQ]

        # conv1 (1x1) with BN2 scale folded into its rows; BN2 bias + ReLU;
        # dropout is identity at inference.
        w1f = p_ref[R_W1:R_W1 + C_MID, 0:C_IN]                       # [C_MID, C_IN]
        h = jnp.dot(w1f, xb, preferred_element_type=jnp.float32)     # [C_MID, 2*LQ]
        h = jnp.maximum(h + bn2_b, 0.0)

        # conv2 taps (k=3, stride 2, zero right-pad) as lane slices of h:
        #   k=0 -> phase 0, k=1 -> phase 1, k=2 -> phase 0 shifted by one output pos.
        h_e = h[:, 0:lq]                                             # tap k=0
        h_o = h[:, lq:2 * lq]                                        # tap k=1
        tap2 = p_ref[R_TAP:R_TAP + 1, 0:lq]                          # hoisted zero-pad mask [1, LQ]
        # Static off-by-one lane slice (one cross-vreg realign on a 1-2 vreg tensor);
        # at per-sample boundaries (lo == L_OUT-1) the read is masked back to the
        # conv2 zero padding by `tap2`.
        h_k2 = h[:, 1:lq + 1] * tap2                                 # tap k=2

        # conv2 as a single fused im2col matmul (BN3 scale folded into rows); BN3 bias + ReLU.
        hcat = jnp.concatenate([h_e, h_o, h_k2], axis=0)             # [3*C_MID, LQ]
        w2f = p_ref[R_W2:R_W2 + C_MID, 0:KERNEL_SIZE * C_MID]        # [C_MID, 3*C_MID]
        h2 = jnp.maximum(
            jnp.dot(w2f, hcat, preferred_element_type=jnp.float32) + bn3_b, 0.0)

        # conv3 (1x1)
        w3 = p_ref[R_W3:R_W3 + C_OUT, 0:C_MID]                       # [C_OUT, C_MID]
        out = jnp.dot(w3, h2, preferred_element_type=jnp.float32)    # [C_OUT, LQ]

        # Squeeze-and-Excitation.  sepb[s, m] = 1 iff lane m belongs to sample s:
        # lane-dim contraction gives the per-sample global sum (mean scale is
        # folded into wse1); the same constant broadcasts the gate back to lanes.
        sepb = p_ref[R_SEPB:R_SEPB + b_per_step, 0:lq]               # [B, LQ]
        pooled = lax.dot_general(out, sepb, (((1,), (1,)), ((), ())),
                                 preferred_element_type=jnp.float32)  # [C_OUT, B]
        wse1 = p_ref[R_SE1:R_SE1 + C_SE, 0:C_OUT]
        wse2 = p_ref[R_SE2:R_SE2 + C_OUT, 0:C_SE]
        se = jnp.maximum(jnp.dot(wse1, pooled,
                                 preferred_element_type=jnp.float32), 0.0)       # [C_SE, B]
        se = jax.nn.sigmoid(jnp.dot(wse2, se,
                                    preferred_element_type=jnp.float32))         # [C_OUT, B]
        gate = jnp.dot(se, sepb, preferred_element_type=jnp.float32)             # [C_OUT, LQ]
        out = out * gate

        # Shortcut: MaxPool1d(stride) == elementwise max of the two stride phases,
        # then conv_1x1 (cfg.shortcut == 'conv').  first_block=True reuses relu(bn1(x)).
        sc_src = xb if first_block else x2
        mp = jnp.maximum(sc_src[:, 0:lq], sc_src[:, lq:2 * lq])      # [C_IN, LQ]
        wsc = p_ref[R_SC:R_SC + C_OUT, 0:C_IN]
        sc = jnp.dot(wsc, mp, preferred_element_type=jnp.float32)    # [C_OUT, LQ]

        # out_c == x_c (conv shortcut matches channels) -> plain residual add.
        o_ref[...] = out + sc
    return kernel


# ---------------- per-generation blocking ----------------
def _tensorcores_per_chip():
    """2 TensorCores per chip on v7x; 1 on v5e/v6e (safe fallback: 1)."""
    try:
        kind = jax.devices()[0].device_kind.lower()
    except Exception:
        return 1
    return 2 if "v7" in kind else 1


def _choose_nblk(n):
    # One grid step per TensorCore when the batch splits evenly and every step
    # keeps lane-dense (multiple-of-128) output blocks; otherwise one big step.
    for nblk in (_tensorcores_per_chip(), 1):
        if nblk >= 1 and n % nblk == 0 and ((n // nblk) * L_OUT) % 128 == 0:
            return nblk
    raise ValueError("batch size incompatible with lane-dense blocking")


# ---------------- parameter packing (host-side, free) ----------------
def pack_params(p, b, lq):
    """One packed, sublane/lane-aligned params+constants slab -> a single resident
    operand per pallas_call (weights, BN columns, hoisted masks/selectors)."""
    slab = np.zeros((R_SEPB + b, lq), dtype=np.float32)

    def put(r, a):
        a = np.asarray(a, dtype=np.float32)
        slab[r:r + a.shape[0], :a.shape[1]] = a

    # Fold BN scales / pool mean into the adjacent matmul weights.
    w1f = np.asarray(p["w1"]) * np.asarray(p["bn2_s"])                       # [C_MID, C_IN]
    wcat = np.transpose(np.asarray(p["w2_torch"]), (0, 2, 1)).reshape(
        C_MID, KERNEL_SIZE * C_MID)                                          # im2col layout
    w2f = wcat * np.asarray(p["bn3_s"])
    wse1s = np.asarray(p["wse1"]) * (1.0 / L_OUT)

    put(R_W1, w1f)
    put(R_W2, w2f)
    put(R_W3, p["w3"])
    put(R_SE1, wse1s)
    put(R_SE2, p["wse2"])
    put(R_SC, p["wsc"])
    put(R_BN1S, p["bn1_s"])
    put(R_BN1B, p["bn1_b"])
    put(R_BN2B, p["bn2_b"])
    put(R_BN3B, p["bn3_b"])

    # Hoisted constants: conv2 k=2 zero-pad mask and the SE sample selector.
    lo = np.arange(lq) % L_OUT
    slab[R_TAP, :] = (lo != L_OUT - 1).astype(np.float32)
    grp = np.arange(lq) // L_OUT
    slab[R_SEPB:R_SEPB + b, :] = (grp[None, :] == np.arange(b)[:, None]).astype(np.float32)
    return jnp.asarray(slab)


# ---------------- wrapper ----------------
def resnet_bottleneck_block(x, p):
    """x: [N, C_IN, L] float32 -> [N, C_OUT, L_OUT] float32 (inference)."""
    n = x.shape[0]
    nblk = _choose_nblk(n)
    b = n // nblk                 # samples fused per grid step
    lq = b * L_OUT                # output lanes per grid step (multiple of 128)

    # Layout plumbing (outside the kernel): de-interleave the two stride phases of
    # the length axis and fuse batch into lanes:
    #   x_d[c, ((i*2 + ph)*b + s)*L_OUT + lo] = x[i*b + s, c, 2*lo + ph]
    x_d = (x.reshape(nblk, b, C_IN, L_OUT, STRIDE)
             .transpose(2, 0, 4, 1, 3)
             .reshape(C_IN, nblk * STRIDE * lq))

    slab = pack_params(p, b, lq)
    p_rows = slab.shape[0]

    # Advisory cost estimate: the kernel is overhead/latency bound; this just
    # helps XLA schedule/overlap the short custom call.
    mxu_flops = 2 * (C_MID * C_IN * 2 * lq + C_MID * 3 * C_MID * lq
                     + C_OUT * C_MID * lq + C_OUT * lq * b + C_SE * C_OUT * b
                     + C_OUT * C_SE * b + C_OUT * b * lq + C_OUT * C_IN * lq)
    vpu_flops = 10 * C_IN * 2 * lq + 8 * C_MID * 2 * lq + 4 * C_OUT * lq
    cost = pl.CostEstimate(
        flops=int(nblk * (mxu_flops + vpu_flops)),
        transcendentals=int(nblk * C_OUT * b),
        bytes_accessed=int(x_d.size * 4 + slab.size * 4 + C_OUT * nblk * lq * 4))

    out_flat = pl.pallas_call(
        make_kernel(b, lq, FIRST_BLOCK),
        out_shape=jax.ShapeDtypeStruct((C_OUT, nblk * lq), jnp.float32),
        grid=(nblk,),
        in_specs=[
            pl.BlockSpec((C_IN, STRIDE * lq), lambda i: (0, i)),   # activation slab
            pl.BlockSpec((p_rows, lq), lambda i: (0, 0)),          # params+constants (resident)
        ],
        out_specs=pl.BlockSpec((C_OUT, lq), lambda i: (0, i)),     # lane-dense output
        compiler_params=pltpu.CompilerParams(dimension_semantics=("parallel",)),
        cost_estimate=cost,
    )(x_d, slab)

    # back to PyTorch NCL layout
    return (out_flat.reshape(C_OUT, nblk, b, L_OUT)
                    .transpose(1, 2, 0, 3)
                    .reshape(n, C_OUT, L_OUT))


# ---------------- parameter init (deterministic, synthetic) ----------------
def fold_bn(gamma, beta, mean, var):
    scale = gamma / jnp.sqrt(var + BN_EPS)
    bias = beta - mean * scale
    return (scale.reshape(-1, 1).astype(jnp.float32),
            bias.reshape(-1, 1).astype(jnp.float32))


def init_params(key):
    ks = list(jax.random.split(key, 16))
    nrm = lambda k, s: (0.1 * jax.random.normal(k, s)).astype(jnp.float32)

    def bn(k, c):
        k1, k2, k3, k4 = jax.random.split(k, 4)
        gamma = 1.0 + 0.1 * jax.random.normal(k1, (c,))
        beta = 0.1 * jax.random.normal(k2, (c,))
        mean = 0.1 * jax.random.normal(k3, (c,))
        var = jax.random.uniform(k4, (c,), minval=0.5, maxval=1.5)
        return fold_bn(gamma, beta, mean, var)

    p = {}
    p["bn1_s"], p["bn1_b"] = bn(ks[0], C_IN)
    p["bn2_s"], p["bn2_b"] = bn(ks[1], C_MID)
    p["bn3_s"], p["bn3_b"] = bn(ks[2], C_MID)
    p["w1"] = nrm(ks[3], (C_MID, C_IN))                       # conv1 [O, I] (k=1 squeezed)
    p["w2_torch"] = nrm(ks[4], (C_MID, C_MID, KERNEL_SIZE))   # conv2 PyTorch layout [O, I, K]
    p["w3"] = nrm(ks[5], (C_OUT, C_MID))
    p["wse1"] = nrm(ks[6], (C_SE, C_OUT))
    p["wse2"] = nrm(ks[7], (C_OUT, C_SE))
    p["wsc"] = nrm(ks[8], (C_OUT, C_IN))
    return p


# ---------------- plain-JAX reference (for verification only) ----------------
def reference(x, p):
    relu = lambda v: jnp.maximum(v, 0.0)
    xb = relu(x * p["bn1_s"] + p["bn1_b"])
    h = jnp.einsum("oc,ncl->nol", p["w1"], xb)
    h = relu(h * p["bn2_s"] + p["bn2_b"])
    conv2 = lax.conv_general_dilated(
        h, p["w2_torch"], window_strides=(STRIDE,),
        padding=((PAD_LEFT, PAD_RIGHT),), dimension_numbers=("NCH", "OIH", "NCH"))
    h2 = relu(conv2 * p["bn3_s"] + p["bn3_b"])
    out = jnp.einsum("oc,ncl->nol", p["w3"], h2)
    pooled = out.mean(axis=-1, keepdims=True)
    se = relu(jnp.einsum("oc,ncl->nol", p["wse1"], pooled))
    se = jax.nn.sigmoid(jnp.einsum("oc,ncl->nol", p["wse2"], se))
    out = out * se
    sc_in = xb if FIRST_BLOCK else x
    mp = sc_in.reshape(sc_in.shape[0], C_IN, L // STRIDE, STRIDE).max(axis=-1)
    sc = jnp.einsum("oc,ncl->nol", p["wsc"], mp)
    return out + sc


if __name__ == "__main__":
    key = jax.random.PRNGKey(0)
    kx, kp = jax.random.split(key)
    x = jax.random.normal(kx, (N, C_IN, L), dtype=jnp.float32)
    params = init_params(kp)

    out = jax.block_until_ready(resnet_bottleneck_block(x, params))

    ref = jax.block_until_ready(reference(x, params))
    np.testing.assert_allclose(np.asarray(out), np.asarray(ref), rtol=2e-4, atol=2e-4)

    print("KERNEL_OK")
</pallas_src>

<mosaic_0001>
module attributes {stable_mosaic.version = 11 : i64} {
  func.func @kernel(%arg0: i32, %arg1: memref<16x512xf32, #tpu.memory_space<vmem>>, %arg2: memref<192x256xf32, #tpu.memory_space<vmem>>, %arg3: memref<32x256xf32, #tpu.memory_space<vmem>>) attributes {dimension_semantics = [#tpu.dimension_semantics<parallel>], iteration_bounds = array<i64: 1>, scalar_prefetch = 0 : i64, scratch_operands = 0 : i64, tpu.core_type = #tpu.core_type<tc>, window_params = [{transform_indices = @transform_0, window_bounds = array<i64: 16, 512>}, {pipeline_mode = #tpu.pipeline_mode<synchronous>, transform_indices = @transform_1, window_bounds = array<i64: 192, 256>}, {transform_indices = @transform_2, window_bounds = array<i64: 32, 256>}]} {
    %c0 = arith.constant 0 : index
    %c0_0 = arith.constant 0 : index
    %0 = vector.load %arg1[%c0, %c0_0] : memref<16x512xf32, #tpu.memory_space<vmem>>, vector<16x512xf32>
    %c120 = arith.constant 120 : index
    %c0_1 = arith.constant 0 : index
    %1 = vector.load %arg2[%c120, %c0_1] : memref<192x256xf32, #tpu.memory_space<vmem>>, vector<16x1xf32>
    %c136 = arith.constant 136 : index
    %c0_2 = arith.constant 0 : index
    %2 = vector.load %arg2[%c136, %c0_2] : memref<192x256xf32, #tpu.memory_space<vmem>>, vector<16x1xf32>
    %c152 = arith.constant 152 : index
    %c0_3 = arith.constant 0 : index
    %3 = vector.load %arg2[%c152, %c0_3] : memref<192x256xf32, #tpu.memory_space<vmem>>, vector<8x1xf32>
    %c160 = arith.constant 160 : index
    %c0_4 = arith.constant 0 : index
    %4 = vector.load %arg2[%c160, %c0_4] : memref<192x256xf32, #tpu.memory_space<vmem>>, vector<8x1xf32>
    %5 = vector.broadcast %1 : vector<16x1xf32> to vector<16x512xf32>
    %6 = arith.mulf %0, %5 : vector<16x512xf32>
    %7 = vector.broadcast %2 : vector<16x1xf32> to vector<16x512xf32>
    %8 = arith.addf %6, %7 : vector<16x512xf32>
    %cst = arith.constant 0.000000e+00 : f32
    %9 = vector.broadcast %cst : f32 to vector<16x512xf32>
    %10 = arith.maximumf %8, %9 : vector<16x512xf32>
    %c0_5 = arith.constant 0 : index
    %c0_6 = arith.constant 0 : index
    %11 = vector.load %arg2[%c0_5, %c0_6] : memref<192x256xf32, #tpu.memory_space<vmem>>, vector<8x16xf32>
    %cst_7 = arith.constant dense<0.000000e+00> : vector<8x512xf32>
    %12 = tpu.matmul %11, %10, %cst_7 {dimension_numbers = #tpu.dot_dimension_numbers<[1], [0], [0], [1], [0, 0, 1, 1], [], []>} : vector<8x16xf32>, vector<16x512xf32>, vector<8x512xf32> -> vector<8x512xf32>
    %13 = vector.broadcast %3 : vector<8x1xf32> to vector<8x512xf32>
    %14 = arith.addf %12, %13 : vector<8x512xf32>
    %cst_8 = arith.constant 0.000000e+00 : f32
    %15 = vector.broadcast %cst_8 : f32 to vector<8x512xf32>
    %16 = arith.maximumf %14, %15 : vector<8x512xf32>
    %17 = vector.extract_strided_slice %16 {offsets = [0, 0], sizes = [8, 256], strides = [1, 1]} : vector<8x512xf32> to vector<8x256xf32>
    %18 = vector.extract_strided_slice %16 {offsets = [0, 256], sizes = [8, 256], strides = [1, 1]} : vector<8x512xf32> to vector<8x256xf32>
    %c168 = arith.constant 168 : index
    %c0_9 = arith.constant 0 : index
    %19 = vector.load %arg2[%c168, %c0_9] : memref<192x256xf32, #tpu.memory_space<vmem>>, vector<1x256xf32>
    %20 = vector.extract_strided_slice %16 {offsets = [0, 1], sizes = [8, 256], strides = [1, 1]} : vector<8x512xf32> to vector<8x256xf32>
    %21 = vector.broadcast %19 : vector<1x256xf32> to vector<8x256xf32>
    %22 = arith.mulf %20, %21 : vector<8x256xf32>
    %23 = tpu.concatenate %17, %18, %22 in 0 : vector<8x256xf32>, vector<8x256xf32>, vector<8x256xf32> -> vector<24x256xf32>
    %c8 = arith.constant 8 : index
    %c0_10 = arith.constant 0 : index
    %24 = vector.load %arg2[%c8, %c0_10] : memref<192x256xf32, #tpu.memory_space<vmem>>, vector<8x24xf32>
    %cst_11 = arith.constant dense<0.000000e+00> : vector<8x256xf32>
    %25 = tpu.matmul %24, %23, %cst_11 {dimension_numbers = #tpu.dot_dimension_numbers<[1], [0], [0], [1], [0, 0, 1, 1], [], []>} : vector<8x24xf32>, vector<24x256xf32>, vector<8x256xf32> -> vector<8x256xf32>
    %26 = vector.broadcast %4 : vector<8x1xf32> to vector<8x256xf32>
    %27 = arith.addf %25, %26 : vector<8x256xf32>
    %cst_12 = arith.constant 0.000000e+00 : f32
    %28 = vector.broadcast %cst_12 : f32 to vector<8x256xf32>
    %29 = arith.maximumf %27, %28 : vector<8x256xf32>
    %c16 = arith.constant 16 : index
    %c0_13 = arith.constant 0 : index
    %30 = vector.load %arg2[%c16, %c0_13] : memref<192x256xf32, #tpu.memory_space<vmem>>, vector<32x8xf32>
    %cst_14 = arith.constant dense<0.000000e+00> : vector<32x256xf32>
    %31 = tpu.matmul %30, %29, %cst_14 {dimension_numbers = #tpu.dot_dimension_numbers<[1], [0], [0], [1], [0, 0, 1, 1], [], []>} : vector<32x8xf32>, vector<8x256xf32>, vector<32x256xf32> -> vector<32x256xf32>
    %c176 = arith.constant 176 : index
    %c0_15 = arith.constant 0 : index
    %32 = vector.load %arg2[%c176, %c0_15] : memref<192x256xf32, #tpu.memory_space<vmem>>, vector<16x256xf32>
    %cst_16 = arith.constant dense<0.000000e+00> : vector<32x16xf32>
    %33 = tpu.matmul %31, %32, %cst_16 {dimension_numbers = #tpu.dot_dimension_numbers<[1], [1], [0], [0], [0, 0, 1, 0], [], []>} : vector<32x256xf32>, vector<16x256xf32>, vector<32x16xf32> -> vector<32x16xf32>
    %c48 = arith.constant 48 : index
    %c0_17 = arith.constant 0 : index
    %34 = vector.load %arg2[%c48, %c0_17] : memref<192x256xf32, #tpu.memory_space<vmem>>, vector<8x32xf32>
    %c56 = arith.constant 56 : index
    %c0_18 = arith.constant 0 : index
    %35 = vector.load %arg2[%c56, %c0_18] : memref<192x256xf32, #tpu.memory_space<vmem>>, vector<32x8xf32>
    %cst_19 = arith.constant dense<0.000000e+00> : vector<8x16xf32>
    %36 = tpu.matmul %34, %33, %cst_19 {dimension_numbers = #tpu.dot_dimension_numbers<[1], [0], [0], [1], [0, 0, 1, 1], [], []>} : vector<8x32xf32>, vector<32x16xf32>, vector<8x16xf32> -> vector<8x16xf32>
    %cst_20 = arith.constant 0.000000e+00 : f32
    %37 = vector.broadcast %cst_20 : f32 to vector<8x16xf32>
    %38 = arith.maximumf %36, %37 : vector<8x16xf32>
    %cst_21 = arith.constant dense<0.000000e+00> : vector<32x16xf32>
    %39 = tpu.matmul %35, %38, %cst_21 {dimension_numbers = #tpu.dot_dimension_numbers<[1], [0], [0], [1], [0, 0, 1, 1], [], []>} : vector<32x8xf32>, vector<8x16xf32>, vector<32x16xf32> -> vector<32x16xf32>
    %40 = arith.negf %39 : vector<32x16xf32>
    %41 = math.exp %40 : vector<32x16xf32>
    %cst_22 = arith.constant 1.000000e+00 : f32
    %42 = vector.broadcast %cst_22 : f32 to vector<32x16xf32>
    %43 = arith.addf %42, %41 : vector<32x16xf32>
    %44 = arith.divf %42, %43 : vector<32x16xf32>
    %cst_23 = arith.constant dense<0.000000e+00> : vector<32x256xf32>
    %45 = tpu.matmul %44, %32, %cst_23 {dimension_numbers = #tpu.dot_dimension_numbers<[1], [0], [0], [1], [0, 0, 1, 1], [], []>} : vector<32x16xf32>, vector<16x256xf32>, vector<32x256xf32> -> vector<32x256xf32>
    %46 = arith.mulf %31, %45 : vector<32x256xf32>
    %47 = vector.extract_strided_slice %0 {offsets = [0, 0], sizes = [16, 256], strides = [1, 1]} : vector<16x512xf32> to vector<16x256xf32>
    %48 = vector.extract_strided_slice %0 {offsets = [0, 256], sizes = [16, 256], strides = [1, 1]} : vector<16x512xf32> to vector<16x256xf32>
    %49 = arith.maximumf %47, %48 : vector<16x256xf32>
    %c88 = arith.constant 88 : index
    %c0_24 = arith.constant 0 : index
    %50 = vector.load %arg2[%c88, %c0_24] : memref<192x256xf32, #tpu.memory_space<vmem>>, vector<32x16xf32>
    %cst_25 = arith.constant dense<0.000000e+00> : vector<32x256xf32>
    %51 = tpu.matmul %50, %49, %cst_25 {dimension_numbers = #tpu.dot_dimension_numbers<[1], [0], [0], [1], [0, 0, 1, 1], [], []>} : vector<32x16xf32>, vector<16x256xf32>, vector<32x256xf32> -> vector<32x256xf32>
    %52 = arith.addf %46, %51 : vector<32x256xf32>
    %c0_26 = arith.constant 0 : index
    %c0_27 = arith.constant 0 : index
    %53 = vector.load %arg3[%c0_26, %c0_27] : memref<32x256xf32, #tpu.memory_space<vmem>>, vector<32x256xf32>
    tpu.vector_store %arg3[%c0_26, %c0_27], %52 {strides = array<i32>} : memref<32x256xf32, #tpu.memory_space<vmem>>, vector<32x256xf32>,
    return
  }
  func.func @transform_0(%arg0: i32) -> (i32, i32) {
    %c0_i32 = arith.constant 0 : i32
    %c0_i32_0 = arith.constant 0 : i32
    return %c0_i32, %arg0 : i32, i32
  }
  func.func @transform_1(%arg0: i32) -> (i32, i32) {
    %c0_i32 = arith.constant 0 : i32
    %c0_i32_0 = arith.constant 0 : i32
    %c0_i32_1 = arith.constant 0 : i32
    return %c0_i32, %c0_i32_0 : i32, i32
  }
  func.func @transform_2(%arg0: i32) -> (i32, i32) {
    %c0_i32 = arith.constant 0 : i32
    %c0_i32_0 = arith.constant 0 : i32
    return %c0_i32, %arg0 : i32, i32
  }
}

</mosaic_0001>

<llo_original>
// kernel: tpu_custom_call.1
$region0: #{tpu_custom_call.1}
  #allocation0 [shape = 'u32[]', space=smem, size = 0x4, offset = 0x4, fixed_abs, tag = 'smem constant byte address 0x4 - core index']
  #allocation1 [shape = 'u32[144,128]{1,0:T(1,128)}', space=vmem, size = 0x12000, scoped, tag = 'internal scratch']
  %s0 = inlined_call_operand.hbm [shape: f32[16,512], index: 0, kind: input, shape index: {}]
  %s1 = inlined_call_operand.hbm [shape: f32[192,256], index: 1, kind: input, shape index: {}]
  %s2 = inlined_call_operand.hbm [shape: f32[32,256], index: 2, kind: output, shape index: {}]
  %s3 = sld [smem:[#allocation0]]
  $region26: #{tpu_custom_call.1} parent=0
    _
  %s5 = ssub.s32 1, %s3
  %s6 = scalar_select 0, %s5, %s3
  $region1: #{tpu_custom_call.1} parent=0
    #allocation2 [shape = 'u8[32768]{0}', space=vmem, size = 0x8000, scoped, tag = 'input window, operand 0, single buffered']
    #allocation3 [shape = 's32[1]{0}', space=sflag, size = 0x4, scoped, tag = 'scoped memory for tpu_custom_call.1']
    #allocation4 [shape = 's32[1]{0}', space=sflag, size = 0x4, scoped, tag = 'scoped memory for tpu_custom_call.1']
    #allocation5 [shape = 'u8[196608]{0}', space=vmem, size = 0x30000, scoped, tag = 'input window, operand 1, single buffered']
    #allocation6 [shape = 's32[1]{0}', space=sflag, size = 0x4, scoped, tag = 'scoped memory for tpu_custom_call.1']
    #allocation7 [shape = 'u8[32768]{0}', space=vmem, size = 0x8000, scoped, tag = 'output window, operand 0, single buffered']
    %7 = vsyncpa [#allocation3], 0
    %8 = vsyncpa [#allocation6], 0
    %9 = vsyncpa [#allocation4], 0
    // Predicated region
    $region2: #{tpu_custom_call.1} parent=1 // pred_check
      _
    $region3: #{tpu_custom_call.1} parent=1 // pred_check_branch
      %11 = sbr.rel (0) target = $region5
    $region4: #{tpu_custom_call.1} parent=1 // pred_region
      %s13 = ssub.s32 1024, 1024
      %14 = vsyncadd [#allocation3], %s13
      %s15 = sshll.u32 [#allocation2], 4
      %s16 = int_to_ptr.vmem [resolvable:$true] %s15
      %21 = dma.hbm_to_vmem [thread:$0]  %s0, 1024, %s16, [#allocation3], 512, 512, 32
    $region5: #{tpu_custom_call.1} parent=1 // pred_fallthru
      _
    // Predicated region
    $region6: #{tpu_custom_call.1} parent=1 // pred_check
      _
    $region7: #{tpu_custom_call.1} parent=1 // pred_check_branch
      %23 = sbr.rel (0) target = $region9
    $region8: #{tpu_custom_call.1} parent=1 // pred_region
      %s25 = ssub.s32 6144, 6144
      %26 = vsyncadd [#allocation6], %s25
      %s27 = sshll.u32 [#allocation5], 4
      %s28 = int_to_ptr.vmem [resolvable:$true] %s27
      %33 = dma.hbm_to_vmem [thread:$0]  %s1, 6144, %s28, [#allocation6], 256, 256, 16
    $region9: #{tpu_custom_call.1} parent=1 // pred_fallthru
      _
    // Predicated region
    $region10: #{tpu_custom_call.1} parent=1 // pred_check
      _
    $region11: #{tpu_custom_call.1} parent=1 // pred_check_branch
      %35 = sbr.rel (0) target = $region13
    $region12: #{tpu_custom_call.1} parent=1 // pred_region
      %36 = dma.done [#allocation3], 1024
    $region13: #{tpu_custom_call.1} parent=1 // pred_fallthru
      _
    // Predicated region
    $region14: #{tpu_custom_call.1} parent=1 // pred_check
      _
    $region15: #{tpu_custom_call.1} parent=1 // pred_check_branch
      %38 = sbr.rel (0) target = $region17
    $region16: #{tpu_custom_call.1} parent=1 // pred_region
      %39 = dma.done [#allocation6], 6144
    $region17: #{tpu_custom_call.1} parent=1 // pred_fallthru
      _
    %v40 = vld [vmem:[#allocation2] sm:$0xff]
    %v41 = vld [vmem:[#allocation2 + $0x8] sm:$0xff]
    %v42 = vld [vmem:[#allocation2 + $0x10] sm:$0xff]
    %v43 = vld [vmem:[#allocation2 + $0x18] sm:$0xff]
    %v44 = vld [vmem:[#allocation2 + $0x20] sm:$0xff]
    %v45 = vld [vmem:[#allocation2 + $0x28] sm:$0xff]
    %v46 = vld [vmem:[#allocation2 + $0x30] sm:$0xff]
    %v47 = vld [vmem:[#allocation2 + $0x38] sm:$0xff]
    %v48 = vld [vmem:[#allocation5 + $0xf0] sm:$0xff]
    %v49 = vld [vmem:[#allocation5 + $0x100] sm:$0xff]
    %v50 = vld [vmem:[#allocation5 + $0x110] sm:$0xff]
    %v51 = vld [vmem:[#allocation5 + $0x120] sm:$0xff]
    %v52 = vld [vmem:[#allocation5 + $0x130] sm:$0xff]
    %v53 = vld [vmem:[#allocation5 + $0x140] sm:$0xff]
    %55 = vset.pattern.permute.xlu0 0
    %56 = vperm.xlu0 %55, %v48
    %v57 = vpop.permute.xlu0 %56
    %60 = vset.pattern.permute.xlu0 0
    %61 = vperm.xlu0 %60, %v49
    %v62 = vpop.permute.xlu0 %61
    %v64 = vmul.f32 %v40, %v57
    %v65 = vmul.f32 %v41, %v57
    %v66 = vmul.f32 %v42, %v57
    %v67 = vmul.f32 %v43, %v57
    %v68 = vmul.f32 %v44, %v62
    %v69 = vmul.f32 %v45, %v62
    %v70 = vmul.f32 %v46, %v62
    %v71 = vmul.f32 %v47, %v62
    %73 = vset.pattern.permute.xlu0 0
    %74 = vperm.xlu0 %73, %v50
    %v75 = vpop.permute.xlu0 %74
    %78 = vset.pattern.permute.xlu0 0
    %79 = vperm.xlu0 %78, %v51
    %v80 = vpop.permute.xlu0 %79
    %v82 = vadd.f32 %v64, %v75
    %v83 = vadd.f32 %v65, %v75
    %v84 = vadd.f32 %v66, %v75
    %v85 = vadd.f32 %v67, %v75
    %v86 = vadd.f32 %v68, %v80
    %v87 = vadd.f32 %v69, %v80
    %v88 = vadd.f32 %v70, %v80
    %v89 = vadd.f32 %v71, %v80
    %v90 = vmax.f32 %v82, 0.0
    %v91 = vmax.f32 %v83, 0.0
    %v92 = vmax.f32 %v84, 0.0
    %v93 = vmax.f32 %v85, 0.0
    %v94 = vmax.f32 %v86, 0.0
    %v95 = vmax.f32 %v87, 0.0
    %v96 = vmax.f32 %v88, 0.0
    %v97 = vmax.f32 %v89, 0.0
    %v98 = vld [vmem:[#allocation5] sm:$0xff]
    %100 = vset.pattern.permute.xlu0 0
    %101 = vperm.xlu0 %100, %v52
    %v102 = vpop.permute.xlu0 %101
    %vm104 = vcmask 130048
    %v106 = vsel %vm104, %v98, 0
    %108 = vmatprep.subr.mxu0 0.0
    %109 = vmatpush1.msra.mxu0 0.0
    %110 = vmatprep.subr.mxu0 0.0
    %111 = vmatpush1.msra.mxu0 0.0
    %112 = vmatprep.subr.mxu0 0.0
    %113 = vmatpush1.msra.mxu0 0.0
    %114 = vmatprep.subr.mxu0 0.0
    %115 = vmatpush1.msra.mxu0 0.0
    %116 = vmatprep.subr.mxu0 0.0
    %117 = vmatpush1.msra.mxu0 0.0
    %118 = vmatprep.subr.mxu0 0.0
    %119 = vmatpush1.msra.mxu0 0.0
    %120 = vmatprep.subr.mxu0 0.0
    %121 = vmatpush1.msra.mxu0 0.0
    %122 = vmatprep.subr.mxu0 0.0
    %123 = vmatpush1.msra.mxu0 0.0
    %124 = vmatprep.subr.mxu0 0.0
    %125 = vmatpush1.msra.mxu0 0.0
    %126 = vmatprep.subr.mxu0 0.0
    %127 = vmatpush1.msra.mxu0 0.0
    %128 = vmatprep.subr.mxu0 0.0
    %129 = vmatpush1.msra.mxu0 0.0
    %130 = vmatprep.subr.mxu0 0.0
    %131 = vmatpush1.msra.mxu0 0.0
    %132 = vmatprep.subr.mxu0 0.0
    %133 = vmatpush1.msra.mxu0 0.0
    %134 = vmatprep.subr.mxu0 0.0
    %135 = vmatpush1.msra.mxu0 0.0
    %136 = vmatprep.subr.mxu0 %v95
    %137 = vmatpush1.msra.mxu0 %v94
    %138 = vmatprep.subr.mxu0 %v91
    %139 = vmatpush1.msra.mxu0 %v90
    %140 = vmatprep.subr.mxu0 0.0
    %141 = vmatpush2.msra.mxu0 0.0
    %142 = vmatprep.subr.mxu0 0.0
    %143 = vmatpush2.msra.mxu0 0.0
    %144 = vmatprep.subr.mxu0 0.0
    %145 = vmatpush2.msra.mxu0 0.0
    %146 = vmatprep.subr.mxu0 0.0
    %147 = vmatpush2.msra.mxu0 0.0
    %148 = vmatprep.subr.mxu0 0.0
    %149 = vmatpush2.msra.mxu0 0.0
    %150 = vmatprep.subr.mxu0 0.0
    %151 = vmatpush2.msra.mxu0 0.0
    %152 = vmatprep.subr.mxu0 0.0
    %153 = vmatpush2.msra.mxu0 0.0
    %154 = vmatprep.subr.mxu0 0.0
    %155 = vmatpush2.msra.mxu0 0.0
    %156 = vmatprep.subr.mxu0 0.0
    %157 = vmatpush2.msra.mxu0 0.0
    %158 = vmatprep.subr.mxu0 0.0
    %159 = vmatpush2.msra.mxu0 0.0
    %160 = vmatprep.subr.mxu0 0.0
    %161 = vmatpush2.msra.mxu0 0.0
    %162 = vmatprep.subr.mxu0 0.0
    %163 = vmatpush2.msra.mxu0 0.0
    %164 = vmatprep.subr.mxu0 0.0
    %165 = vmatpush2.msra.mxu0 0.0
    %166 = vmatprep.subr.mxu0 0.0
    %167 = vmatpush2.msra.mxu0 0.0
    %168 = vmatprep.subr.mxu0 0.0
    %169 = vmatpush2.msra.mxu0 0.0
    %170 = vmatprep.subr.mxu0 0.0
    %171 = vmatpush2.msra.mxu0 0.0
    %172 = vmatprep.mubr.f32.mxu0 0.0
    %173 = vmatmul.mubr.f32.gmra.mxu0 %v106
    %v174 = vpop.f32.mrf.mxu0
    %v175 = vadd.f32 %v102, %v174
    %v176 = vpop.f32.mrf.mxu0
    %v177 = vadd.f32 %v102, %v176
    %178 = vdwg.mxu0
    %179 = vmatprep.subr.mxu0 0.0
    %180 = vmatpush1.msra.mxu0 0.0
    %181 = vmatprep.subr.mxu0 0.0
    %182 = vmatpush1.msra.mxu0 0.0
    %183 = vmatprep.subr.mxu0 0.0
    %184 = vmatpush1.msra.mxu0 0.0
    %185 = vmatprep.subr.mxu0 0.0
    %186 = vmatpush1.msra.mxu0 0.0
    %187 = vmatprep.subr.mxu0 0.0
    %188 = vmatpush1.msra.mxu0 0.0
    %189 = vmatprep.subr.mxu0 0.0
    %190 = vmatpush1.msra.mxu0 0.0
    %191 = vmatprep.subr.mxu0 0.0
    %192 = vmatpush1.msra.mxu0 0.0
    %193 = vmatprep.subr.mxu0 0.0
    %194 = vmatpush1.msra.mxu0 0.0
    %195 = vmatprep.subr.mxu0 0.0
    %196 = vmatpush1.msra.mxu0 0.0
    %197 = vmatprep.subr.mxu0 0.0
    %198 = vmatpush1.msra.mxu0 0.0
    %199 = vmatprep.subr.mxu0 0.0
    %200 = vmatpush1.msra.mxu0 0.0
    %201 = vmatprep.subr.mxu0 0.0
    %202 = vmatpush1.msra.mxu0 0.0
    %203 = vmatprep.subr.mxu0 0.0
    %204 = vmatpush1.msra.mxu0 0.0
    %205 = vmatprep.subr.mxu0 0.0
    %206 = vmatpush1.msra.mxu0 0.0
    %207 = vmatprep.subr.mxu0 %v97
    %208 = vmatpush1.msra.mxu0 %v96
    %209 = vmatprep.subr.mxu0 %v93
    %210 = vmatpush1.msra.mxu0 %v92
    %211 = vmatprep.subr.mxu0 0.0
    %212 = vmatpush2.msra.mxu0 0.0
    %213 = vmatprep.subr.mxu0 0.0
    %214 = vmatpush2.msra.mxu0 0.0
    %215 = vmatprep.subr.mxu0 0.0
    %216 = vmatpush2.msra.mxu0 0.0
    %217 = vmatprep.subr.mxu0 0.0
    %218 = vmatpush2.msra.mxu0 0.0
    %219 = vmatprep.subr.mxu0 0.0
    %220 = vmatpush2.msra.mxu0 0.0
    %221 = vmatprep.subr.mxu0 0.0
    %222 = vmatpush2.msra.mxu0 0.0
    %223 = vmatprep.subr.mxu0 0.0
    %224 = vmatpush2.msra.mxu0 0.0
    %225 = vmatprep.subr.mxu0 0.0
    %226 = vmatpush2.msra.mxu0 0.0
    %227 = vmatprep.subr.mxu0 0.0
    %228 = vmatpush2.msra.mxu0 0.0
    %229 = vmatprep.subr.mxu0 0.0
    %230 = vmatpush2.msra.mxu0 0.0
    %231 = vmatprep.subr.mxu0 0.0
    %232 = vmatpush2.msra.mxu0 0.0
    %233 = vmatprep.subr.mxu0 0.0
    %234 = vmatpush2.msra.mxu0 0.0
    %235 = vmatprep.subr.mxu0 0.0
    %236 = vmatpush2.msra.mxu0 0.0
    %237 = vmatprep.subr.mxu0 0.0
    %238 = vmatpush2.msra.mxu0 0.0
    %239 = vmatprep.subr.mxu0 0.0
    %240 = vmatpush2.msra.mxu0 0.0
    %241 = vmatprep.subr.mxu0 0.0
    %242 = vmatpush2.msra.mxu0 0.0
    %243 = vmatprep.mubr.f32.mxu0 0.0
    %244 = vmatmul.mubr.f32.gmra.mxu0 %v106
    %v245 = vpop.f32.mrf.mxu0
    %v246 = vadd.f32 %v102, %v245
    %v247 = vpop.f32.mrf.mxu0
    %v248 = vadd.f32 %v102, %v247
    %249 = vdwg.mxu0
    %v250 = vmax.f32 %v175, 0.0
    %v251 = vmax.f32 %v177, 0.0
    %v252 = vmax.f32 %v246, 0.0
    %v253 = vmax.f32 %v248, 0.0
    %s254 = scalar_lea.vmem [#allocation5], 336
    %v255 = vld [vmem:[%s254] ss:$8 sm:$0x3]
    %v257 = vlaneseq
    %v258 = vshrl.u32 %v257, 7
    %v259 = vsub.s32 0, %v258
    %v260 = vrot.slane %v255, %v259
    %v261 = vlaneseq
    %v262 = vshrl.u32 %v261, 7
    %v263 = vsub.s32 1, %v262
    %v264 = vrot.slane %v255, %v263
    %265 = vrot.lane.b32.xlu0 %v260, 1
    %v266 = vpop.permute.xlu0 %265
    %267 = vrot.lane.b32.xlu0 %v264, 1
    %v268 = vpop.permute.xlu0 %267
    %vm269 = vcmask 7168
    %v270 = vsel %vm269, %v266, %v268
    %v274 = vmul.f32 %v250, %v266
    %v275 = vmul.f32 %v251, %v270
    %v276 = vmul.f32 %v252, %v268
    %280 = vrot.lane.b32.xlu0 %v274, 127
    %v281 = vpop.permute.xlu0 %280
    %282 = vrot.lane.b32.xlu0 %v275, 127
    %v283 = vpop.permute.xlu0 %282
    %284 = vrot.lane.b32.xlu0 %v276, 127
    %v285 = vpop.permute.xlu0 %284
    %vm286 = vcmask 1039360
    %v287 = vsel %vm286, %v281, %v283
    %v288 = vsel %vm286, %v283, %v285
    %v291 = vld [vmem:[#allocation5 + $0x10] sm:$0xff]
    %293 = vset.pattern.permute.xlu0 0
    %294 = vperm.xlu0 %293, %v53
    %v295 = vpop.permute.xlu0 %294
    %vm297 = vcmask 195584
    %v299 = vsel %vm297, %v291, 0
    %301 = vmatprep.subr.mxu0 0.0
    %302 = vmatpush1.msra.mxu0 0.0
    %303 = vmatprep.subr.mxu0 0.0
    %304 = vmatpush1.msra.mxu0 0.0
    %305 = vmatprep.subr.mxu0 0.0
    %306 = vmatpush1.msra.mxu0 0.0
    %307 = vmatprep.subr.mxu0 0.0
    %308 = vmatpush1.msra.mxu0 0.0
    %309 = vmatprep.subr.mxu0 0.0
    %310 = vmatpush1.msra.mxu0 0.0
    %311 = vmatprep.subr.mxu0 0.0
    %312 = vmatpush1.msra.mxu0 0.0
    %313 = vmatprep.subr.mxu0 0.0
    %314 = vmatpush1.msra.mxu0 0.0
    %315 = vmatprep.subr.mxu0 0.0
    %316 = vmatpush1.msra.mxu0 0.0
    %317 = vmatprep.subr.mxu0 0.0
    %318 = vmatpush1.msra.mxu0 0.0
    %319 = vmatprep.subr.mxu0 0.0
    %320 = vmatpush1.msra.mxu0 0.0
    %321 = vmatprep.subr.mxu0 0.0
    %322 = vmatpush1.msra.mxu0 0.0
    %323 = vmatprep.subr.mxu0 0.0
    %324 = vmatpush1.msra.mxu0 0.0
    %325 = vmatprep.subr.mxu0 0.0
    %326 = vmatpush1.msra.mxu0 0.0
    %327 = vmatprep.subr.mxu0 %v288
    %328 = vmatpush1.msra.mxu0 %v287
    %329 = vmatprep.subr.mxu0 %v253
    %330 = vmatpush1.msra.mxu0 %v252
    %331 = vmatprep.subr.mxu0 %v251
    %332 = vmatpush1.msra.mxu0 %v250
    %333 = vmatprep.subr.mxu0 0.0
    %334 = vmatpush2.msra.mxu0 0.0
    %335 = vmatprep.subr.mxu0 0.0
    %336 = vmatpush2.msra.mxu0 0.0
    %337 = vmatprep.subr.mxu0 0.0
    %338 = vmatpush2.msra.mxu0 0.0
    %339 = vmatprep.subr.mxu0 0.0
    %340 = vmatpush2.msra.mxu0 0.0
    %341 = vmatprep.subr.mxu0 0.0
    %342 = vmatpush2.msra.mxu0 0.0
    %343 = vmatprep.subr.mxu0 0.0
    %344 = vmatpush2.msra.mxu0 0.0
    %345 = vmatprep.subr.mxu0 0.0
    %346 = vmatpush2.msra.mxu0 0.0
    %347 = vmatprep.subr.mxu0 0.0
    %348 = vmatpush2.msra.mxu0 0.0
    %349 = vmatprep.subr.mxu0 0.0
    %350 = vmatpush2.msra.mxu0 0.0
    %351 = vmatprep.subr.mxu0 0.0
    %352 = vmatpush2.msra.mxu0 0.0
    %353 = vmatprep.subr.mxu0 0.0
    %354 = vmatpush2.msra.mxu0 0.0
    %355 = vmatprep.subr.mxu0 0.0
    %356 = vmatpush2.msra.mxu0 0.0
    %357 = vmatprep.subr.mxu0 0.0
    %358 = vmatpush2.msra.mxu0 0.0
    %359 = vmatprep.subr.mxu0 0.0
    %360 = vmatpush2.msra.mxu0 0.0
    %361 = vmatprep.subr.mxu0 0.0
    %362 = vmatpush2.msra.mxu0 0.0
    %363 = vmatprep.subr.mxu0 0.0
    %364 = vmatpush2.msra.mxu0 0.0
    %365 = vmatprep.mubr.f32.mxu0 0.0
    %366 = vmatmul.mubr.f32.gmra.mxu0 %v299
    %v367 = vpop.f32.mrf.mxu0
    %v368 = vadd.f32 %v295, %v367
    %v369 = vpop.f32.mrf.mxu0
    %v370 = vadd.f32 %v295, %v369
    %371 = vdwg.mxu0
    %v372 = vmax.f32 %v368, 0.0
    %v373 = vmax.f32 %v370, 0.0
    %v374 = vld [vmem:[#allocation5 + $0x20] sm:$0xff]
    %v375 = vld [vmem:[#allocation5 + $0x30] sm:$0xff]
    %v376 = vld [vmem:[#allocation5 + $0x40] sm:$0xff]
    %v377 = vld [vmem:[#allocation5 + $0x50] sm:$0xff]
    %vm378 = vcmask 64512
    %v380 = vsel %vm378, %v374, 0
    %v383 = vsel %vm378, %v375, 0
    %v386 = vsel %vm378, %v376, 0
    %v389 = vsel %vm378, %v377, 0
    %391 = vmatprep.subr.mxu0 0.0
    %392 = vmatpush1.msra.mxu0 0.0
    %393 = vmatprep.subr.mxu0 0.0
    %394 = vmatpush1.msra.mxu0 0.0
    %395 = vmatprep.subr.mxu0 0.0
    %396 = vmatpush1.msra.mxu0 0.0
    %397 = vmatprep.subr.mxu0 0.0
    %398 = vmatpush1.msra.mxu0 0.0
    %399 = vmatprep.subr.mxu0 0.0
    %400 = vmatpush1.msra.mxu0 0.0
    %401 = vmatprep.subr.mxu0 0.0
    %402 = vmatpush1.msra.mxu0 0.0
    %403 = vmatprep.subr.mxu0 0.0
    %404 = vmatpush1.msra.mxu0 0.0
    %405 = vmatprep.subr.mxu0 0.0
    %406 = vmatpush1.msra.mxu0 0.0
    %407 = vmatprep.subr.mxu0 0.0
    %408 = vmatpush1.msra.mxu0 0.0
    %409 = vmatprep.subr.mxu0 0.0
    %410 = vmatpush1.msra.mxu0 0.0
    %411 = vmatprep.subr.mxu0 0.0
    %412 = vmatpush1.msra.mxu0 0.0
    %413 = vmatprep.subr.mxu0 0.0
    %414 = vmatpush1.msra.mxu0 0.0
    %415 = vmatprep.subr.mxu0 0.0
    %416 = vmatpush1.msra.mxu0 0.0
    %417 = vmatprep.subr.mxu0 0.0
    %418 = vmatpush1.msra.mxu0 0.0
    %419 = vmatprep.subr.mxu0 0.0
    %420 = vmatpush1.msra.mxu0 0.0
    %421 = vmatprep.subr.mxu0 %v373
    %422 = vmatpush1.msra.mxu0 %v372
    %423 = vmatprep.subr.mxu0 0.0
    %424 = vmatpush2.msra.mxu0 0.0
    %425 = vmatprep.subr.mxu0 0.0
    %426 = vmatpush2.msra.mxu0 0.0
    %427 = vmatprep.subr.mxu0 0.0
    %428 = vmatpush2.msra.mxu0 0.0
    %429 = vmatprep.subr.mxu0 0.0
    %430 = vmatpush2.msra.mxu0 0.0
    %431 = vmatprep.subr.mxu0 0.0
    %432 = vmatpush2.msra.mxu0 0.0
    %433 = vmatprep.subr.mxu0 0.0
    %434 = vmatpush2.msra.mxu0 0.0
    %435 = vmatprep.subr.mxu0 0.0
    %436 = vmatpush2.msra.mxu0 0.0
    %437 = vmatprep.subr.mxu0 0.0
    %438 = vmatpush2.msra.mxu0 0.0
    %439 = vmatprep.subr.mxu0 0.0
    %440 = vmatpush2.msra.mxu0 0.0
    %441 = vmatprep.subr.mxu0 0.0
    %442 = vmatpush2.msra.mxu0 0.0
    %443 = vmatprep.subr.mxu0 0.0
    %444 = vmatpush2.msra.mxu0 0.0
    %445 = vmatprep.subr.mxu0 0.0
    %446 = vmatpush2.msra.mxu0 0.0
    %447 = vmatprep.subr.mxu0 0.0
    %448 = vmatpush2.msra.mxu0 0.0
    %449 = vmatprep.subr.mxu0 0.0
    %450 = vmatpush2.msra.mxu0 0.0
    %451 = vmatprep.subr.mxu0 0.0
    %452 = vmatpush2.msra.mxu0 0.0
    %453 = vmatprep.subr.mxu0 0.0
    %454 = vmatpush2.msra.mxu0 0.0
    %455 = vmatprep.mubr.f32.mxu0 0.0
    %456 = vmatmul.mubr.f32.gmra.mxu0 %v380
    %v457 = vpop.f32.mrf.mxu0
    %v458 = vadd.f32 0.0, %v457
    %v459 = vpop.f32.mrf.mxu0
    %v460 = vadd.f32 0.0, %v459
    %461 = vmatprep.mubr.f32.mxu0 0.0
    %462 = vmatmul.mubr.f32.gmra.mxu0 %v383
    %v463 = vpop.f32.mrf.mxu0
    %v464 = vadd.f32 0.0, %v463
    %v465 = vpop.f32.mrf.mxu0
    %v466 = vadd.f32 0.0, %v465
    %467 = vmatprep.mubr.f32.mxu0 0.0
    %468 = vmatmul.mubr.f32.gmra.mxu0 %v386
    %v469 = vpop.f32.mrf.mxu0
    %v470 = vadd.f32 0.0, %v469
    %v471 = vpop.f32.mrf.mxu0
    %v472 = vadd.f32 0.0, %v471
    %473 = vmatprep.mubr.f32.mxu0 0.0
    %474 = vmatmul.mubr.f32.gmra.mxu0 %v389
    %v475 = vpop.f32.mrf.mxu0
    %v476 = vadd.f32 0.0, %v475
    %v477 = vpop.f32.mrf.mxu0
    %v478 = vadd.f32 0.0, %v477
    %479 = vdwg.mxu0
    %v480 = vld [vmem:[#allocation5 + $0x160] sm:$0xff]
    %v481 = vld [vmem:[#allocation5 + $0x168] sm:$0xff]
    %v482 = vld [vmem:[#allocation5 + $0x170] sm:$0xff]
    %v483 = vld [vmem:[#allocation5 + $0x178] sm:$0xff]
    %484 = vmatprep.subr.mxu0 0.0
    %485 = vmatpush1.xpose.msra.mxu0 0.0
    %486 = vmatprep.subr.mxu0 0.0
    %487 = vmatpush1.xpose.msra.mxu0 0.0
    %488 = vmatprep.subr.mxu0 0.0
    %489 = vmatpush1.xpose.msra.mxu0 0.0
    %490 = vmatprep.subr.mxu0 0.0
    %491 = vmatpush1.xpose.msra.mxu0 0.0
    %492 = vmatprep.subr.mxu0 0.0
    %493 = vmatpush1.xpose.msra.mxu0 0.0
    %494 = vmatprep.subr.mxu0 0.0
    %495 = vmatpush1.xpose.msra.mxu0 0.0
    %496 = vmatprep.subr.mxu0 0.0
    %497 = vmatpush1.xpose.msra.mxu0 0.0
    %498 = vmatprep.subr.mxu0 0.0
    %499 = vmatpush1.xpose.msra.mxu0 0.0
    %500 = vmatprep.subr.mxu0 0.0
    %501 = vmatpush1.xpose.msra.mxu0 0.0
    %502 = vmatprep.subr.mxu0 0.0
    %503 = vmatpush1.xpose.msra.mxu0 0.0
    %504 = vmatprep.subr.mxu0 0.0
    %505 = vmatpush1.xpose.msra.mxu0 0.0
    %506 = vmatprep.subr.mxu0 0.0
    %507 = vmatpush1.xpose.msra.mxu0 0.0
    %508 = vmatprep.subr.mxu0 0.0
    %509 = vmatpush1.xpose.msra.mxu0 0.0
    %510 = vmatprep.subr.mxu0 0.0
    %511 = vmatpush1.xpose.msra.mxu0 0.0
    %512 = vmatprep.subr.mxu0 %v483
    %513 = vmatpush1.xpose.msra.mxu0 %v482
    %514 = vmatprep.subr.mxu0 %v481
    %515 = vmatpush1.xpose.msra.mxu0 %v480
    %516 = vmatprep.subr.mxu0 0.0
    %517 = vmatpush2.xpose.msra.mxu0 0.0
    %518 = vmatprep.subr.mxu0 0.0
    %519 = vmatpush2.xpose.msra.mxu0 0.0
    %520 = vmatprep.subr.mxu0 0.0
    %521 = vmatpush2.xpose.msra.mxu0 0.0
    %522 = vmatprep.subr.mxu0 0.0
    %523 = vmatpush2.xpose.msra.mxu0 0.0
    %524 = vmatprep.subr.mxu0 0.0
    %525 = vmatpush2.xpose.msra.mxu0 0.0
    %526 = vmatprep.subr.mxu0 0.0
    %527 = vmatpush2.xpose.msra.mxu0 0.0
    %528 = vmatprep.subr.mxu0 0.0
    %529 = vmatpush2.xpose.msra.mxu0 0.0
    %530 = vmatprep.subr.mxu0 0.0
    %531 = vmatpush2.xpose.msra.mxu0 0.0
    %532 = vmatprep.subr.mxu0 0.0
    %533 = vmatpush2.xpose.msra.mxu0 0.0
    %534 = vmatprep.subr.mxu0 0.0
    %535 = vmatpush2.xpose.msra.mxu0 0.0
    %536 = vmatprep.subr.mxu0 0.0
    %537 = vmatpush2.xpose.msra.mxu0 0.0
    %538 = vmatprep.subr.mxu0 0.0
    %539 = vmatpush2.xpose.msra.mxu0 0.0
    %540 = vmatprep.subr.mxu0 0.0
    %541 = vmatpush2.xpose.msra.mxu0 0.0
    %542 = vmatprep.subr.mxu0 0.0
    %543 = vmatpush2.xpose.msra.mxu0 0.0
    %544 = vmatprep.subr.mxu0 0.0
    %545 = vmatpush2.xpose.msra.mxu0 0.0
    %546 = vmatprep.subr.mxu0 0.0
    %547 = vmatpush2.xpose.msra.mxu0 0.0
    %548 = vmatprep.mubr.f32.mxu0 %v460
    %549 = vmatmul.mubr.f32.gmra.mxu0 %v458
    %v550 = vpop.f32.mrf.mxu0
    %v551 = vadd.f32 0.0, %v550
    %v552 = vpop.f32.mrf.mxu0
    %553 = vmatprep.mubr.f32.mxu0 %v466
    %554 = vmatmul.mubr.f32.gmra.mxu0 %v464
    %v555 = vpop.f32.mrf.mxu0
    %v556 = vadd.f32 0.0, %v555
    %v557 = vpop.f32.mrf.mxu0
    %558 = vmatprep.mubr.f32.mxu0 %v472
    %559 = vmatmul.mubr.f32.gmra.mxu0 %v470
    %v560 = vpop.f32.mrf.mxu0
    %v561 = vadd.f32 0.0, %v560
    %v562 = vpop.f32.mrf.mxu0
    %563 = vmatprep.mubr.f32.mxu0 %v478
    %564 = vmatmul.mubr.f32.gmra.mxu0 %v476
    %v565 = vpop.f32.mrf.mxu0
    %v566 = vadd.f32 0.0, %v565
    %v567 = vpop.f32.mrf.mxu0
    %568 = vdwg.mxu0
    %v569 = vld [vmem:[#allocation5 + $0x60] sm:$0xff]
    %v570 = vld [vmem:[#allocation5 + $0x70] sm:$0xff]
    %v571 = vld [vmem:[#allocation5 + $0x80] sm:$0xff]
    %v572 = vld [vmem:[#allocation5 + $0x90] sm:$0xff]
    %v573 = vld [vmem:[#allocation5 + $0xa0] sm:$0xff]
    %vm574 = vcmask 261120
    %v576 = vsel %vm574, %v569, 0
    %578 = vmatprep.subr.mxu0 0.0
    %579 = vmatpush1.msra.mxu0 0.0
    %580 = vmatprep.subr.mxu0 0.0
    %581 = vmatpush1.msra.mxu0 0.0
    %582 = vmatprep.subr.mxu0 0.0
    %583 = vmatpush1.msra.mxu0 0.0
    %584 = vmatprep.subr.mxu0 0.0
    %585 = vmatpush1.msra.mxu0 0.0
    %586 = vmatprep.subr.mxu0 0.0
    %587 = vmatpush1.msra.mxu0 0.0
    %588 = vmatprep.subr.mxu0 0.0
    %589 = vmatpush1.msra.mxu0 0.0
    %590 = vmatprep.subr.mxu0 0.0
    %591 = vmatpush1.msra.mxu0 0.0
    %592 = vmatprep.subr.mxu0 0.0
    %593 = vmatpush1.msra.mxu0 0.0
    %594 = vmatprep.subr.mxu0 0.0
    %595 = vmatpush1.msra.mxu0 0.0
    %596 = vmatprep.subr.mxu0 0.0
    %597 = vmatpush1.msra.mxu0 0.0
    %598 = vmatprep.subr.mxu0 0.0
    %599 = vmatpush1.msra.mxu0 0.0
    %600 = vmatprep.subr.mxu0 0.0
    %601 = vmatpush1.msra.mxu0 0.0
    %602 = vmatprep.subr.mxu0 0.0
    %603 = vmatpush1.msra.mxu0 %v566
    %604 = vmatprep.subr.mxu0 0.0
    %605 = vmatpush1.msra.mxu0 %v561
    %606 = vmatprep.subr.mxu0 0.0
    %607 = vmatpush1.msra.mxu0 %v556
    %608 = vmatprep.subr.mxu0 0.0
    %609 = vmatpush1.msra.mxu0 %v551
    %610 = vmatprep.subr.mxu0 0.0
    %611 = vmatpush2.msra.mxu0 0.0
    %612 = vmatprep.subr.mxu0 0.0
    %613 = vmatpush2.msra.mxu0 0.0
    %614 = vmatprep.subr.mxu0 0.0
    %615 = vmatpush2.msra.mxu0 0.0
    %616 = vmatprep.subr.mxu0 0.0
    %617 = vmatpush2.msra.mxu0 0.0
    %618 = vmatprep.subr.mxu0 0.0
    %619 = vmatpush2.msra.mxu0 0.0
    %620 = vmatprep.subr.mxu0 0.0
    %621 = vmatpush2.msra.mxu0 0.0
    %622 = vmatprep.subr.mxu0 0.0
    %623 = vmatpush2.msra.mxu0 0.0
    %624 = vmatprep.subr.mxu0 0.0
    %625 = vmatpush2.msra.mxu0 0.0
    %626 = vmatprep.subr.mxu0 0.0
    %627 = vmatpush2.msra.mxu0 0.0
    %628 = vmatprep.subr.mxu0 0.0
    %629 = vmatpush2.msra.mxu0 0.0
    %630 = vmatprep.subr.mxu0 0.0
    %631 = vmatpush2.msra.mxu0 0.0
    %632 = vmatprep.subr.mxu0 0.0
    %633 = vmatpush2.msra.mxu0 0.0
    %634 = vmatprep.subr.mxu0 0.0
    %635 = vmatpush2.msra.mxu0 0.0
    %636 = vmatprep.subr.mxu0 0.0
    %637 = vmatpush2.msra.mxu0 0.0
    %638 = vmatprep.subr.mxu0 0.0
    %639 = vmatpush2.msra.mxu0 0.0
    %640 = vmatprep.subr.mxu0 0.0
    %641 = vmatpush2.msra.mxu0 0.0
    %642 = vmatprep.mubr.f32.mxu0 0.0
    %643 = vmatmul.mubr.f32.gmra.mxu0 %v576
    %v644 = vpop.f32.mrf.mxu0
    %v645 = vadd.f32 0.0, %v644
    %v646 = vpop.f32.mrf.mxu0
    %647 = vdwg.mxu0
    %v648 = vmax.f32 %v645, 0.0
    %v650 = vsel %vm378, %v570, 0
    %v653 = vsel %vm378, %v571, 0
    %v656 = vsel %vm378, %v572, 0
    %v659 = vsel %vm378, %v573, 0
    %661 = vmatprep.subr.mxu0 0.0
    %662 = vmatpush1.msra.mxu0 0.0
    %663 = vmatprep.subr.mxu0 0.0
    %664 = vmatpush1.msra.mxu0 0.0
    %665 = vmatprep.subr.mxu0 0.0
    %666 = vmatpush1.msra.mxu0 0.0
    %667 = vmatprep.subr.mxu0 0.0
    %668 = vmatpush1.msra.mxu0 0.0
    %669 = vmatprep.subr.mxu0 0.0
    %670 = vmatpush1.msra.mxu0 0.0
    %671 = vmatprep.subr.mxu0 0.0
    %672 = vmatpush1.msra.mxu0 0.0
    %673 = vmatprep.subr.mxu0 0.0
    %674 = vmatpush1.msra.mxu0 0.0
    %675 = vmatprep.subr.mxu0 0.0
    %676 = vmatpush1.msra.mxu0 0.0
    %677 = vmatprep.subr.mxu0 0.0
    %678 = vmatpush1.msra.mxu0 0.0
    %679 = vmatprep.subr.mxu0 0.0
    %680 = vmatpush1.msra.mxu0 0.0
    %681 = vmatprep.subr.mxu0 0.0
    %682 = vmatpush1.msra.mxu0 0.0
    %683 = vmatprep.subr.mxu0 0.0
    %684 = vmatpush1.msra.mxu0 0.0
    %685 = vmatprep.subr.mxu0 0.0
    %686 = vmatpush1.msra.mxu0 0.0
    %687 = vmatprep.subr.mxu0 0.0
    %688 = vmatpush1.msra.mxu0 0.0
    %689 = vmatprep.subr.mxu0 0.0
    %690 = vmatpush1.msra.mxu0 0.0
    %691 = vmatprep.subr.mxu0 0.0
    %692 = vmatpush1.msra.mxu0 %v648
    %693 = vmatprep.subr.mxu0 0.0
    %694 = vmatpush2.msra.mxu0 0.0
    %695 = vmatprep.subr.mxu0 0.0
    %696 = vmatpush2.msra.mxu0 0.0
    %697 = vmatprep.subr.mxu0 0.0
    %698 = vmatpush2.msra.mxu0 0.0
    %699 = vmatprep.subr.mxu0 0.0
    %700 = vmatpush2.msra.mxu0 0.0
    %701 = vmatprep.subr.mxu0 0.0
    %702 = vmatpush2.msra.mxu0 0.0
    %703 = vmatprep.subr.mxu0 0.0
    %704 = vmatpush2.msra.mxu0 0.0
    %705 = vmatprep.subr.mxu0 0.0
    %706 = vmatpush2.msra.mxu0 0.0
    %707 = vmatprep.subr.mxu0 0.0
    %708 = vmatpush2.msra.mxu0 0.0
    %709 = vmatprep.subr.mxu0 0.0
    %710 = vmatpush2.msra.mxu0 0.0
    %711 = vmatprep.subr.mxu0 0.0
    %712 = vmatpush2.msra.mxu0 0.0
    %713 = vmatprep.subr.mxu0 0.0
    %714 = vmatpush2.msra.mxu0 0.0
    %715 = vmatprep.subr.mxu0 0.0
    %716 = vmatpush2.msra.mxu0 0.0
    %717 = vmatprep.subr.mxu0 0.0
    %718 = vmatpush2.msra.mxu0 0.0
    %719 = vmatprep.subr.mxu0 0.0
    %720 = vmatpush2.msra.mxu0 0.0
    %721 = vmatprep.subr.mxu0 0.0
    %722 = vmatpush2.msra.mxu0 0.0
    %723 = vmatprep.subr.mxu0 0.0
    %724 = vmatpush2.msra.mxu0 0.0
    %725 = vmatprep.mubr.f32.mxu0 0.0
    %726 = vmatmul.mubr.f32.gmra.mxu0 %v650
    %v727 = vpop.f32.mrf.mxu0
    %v728 = vadd.f32 0.0, %v727
    %v729 = vpop.f32.mrf.mxu0
    %730 = vmatprep.mubr.f32.mxu0 0.0
    %731 = vmatmul.mubr.f32.gmra.mxu0 %v653
    %v732 = vpop.f32.mrf.mxu0
    %v733 = vadd.f32 0.0, %v732
    %v734 = vpop.f32.mrf.mxu0
    %735 = vmatprep.mubr.f32.mxu0 0.0
    %736 = vmatmul.mubr.f32.gmra.mxu0 %v656
    %v737 = vpop.f32.mrf.mxu0
    %v738 = vadd.f32 0.0, %v737
    %v739 = vpop.f32.mrf.mxu0
    %740 = vmatprep.mubr.f32.mxu0 0.0
    %741 = vmatmul.mubr.f32.gmra.mxu0 %v659
    %v742 = vpop.f32.mrf.mxu0
    %v743 = vadd.f32 0.0, %v742
    %v744 = vpop.f32.mrf.mxu0
    %745 = vdwg.mxu0
    %v746 = vxor.u32 %v728, 2147483648
    %v747 = vxor.u32 %v733, 2147483648
    %v748 = vxor.u32 %v738, 2147483648
    %v749 = vxor.u32 %v743, 2147483648
    %v750 = vmul.f32 %v746, 1.442695
    %v751 = vpow.pop %v750
    %v752 = vmul.f32 %v747, 1.442695
    %v753 = vpow.pop %v752
    %v754 = vmul.f32 %v748, 1.442695
    %v755 = vpow.pop %v754
    %v756 = vmul.f32 %v749, 1.442695
    %v757 = vpow.pop %v756
    %v758 = vadd.f32 %v751, 1.0
    %v759 = vadd.f32 %v753, 1.0
    %v760 = vadd.f32 %v755, 1.0
    %v761 = vadd.f32 %v757, 1.0
    %v762 = vrcp.pop %v758
    %v763 = vmul.f32 1.0, %v762
    %v764 = vrcp.pop %v759
    %v765 = vmul.f32 1.0, %v764
    %v766 = vrcp.pop %v760
    %v767 = vmul.f32 1.0, %v766
    %v768 = vrcp.pop %v761
    %v769 = vmul.f32 1.0, %v768
    %v771 = vsel %vm104, %v763, 0
    %v774 = vsel %vm104, %v765, 0
    %v777 = vsel %vm104, %v767, 0
    %v780 = vsel %vm104, %v769, 0
    %782 = vmatprep.subr.mxu0 0.0
    %783 = vmatpush1.msra.mxu0 0.0
    %784 = vmatprep.subr.mxu0 0.0
    %785 = vmatpush1.msra.mxu0 0.0
    %786 = vmatprep.subr.mxu0 0.0
    %787 = vmatpush1.msra.mxu0 0.0
    %788 = vmatprep.subr.mxu0 0.0
    %789 = vmatpush1.msra.mxu0 0.0
    %790 = vmatprep.subr.mxu0 0.0
    %791 = vmatpush1.msra.mxu0 0.0
    %792 = vmatprep.subr.mxu0 0.0
    %793 = vmatpush1.msra.mxu0 0.0
    %794 = vmatprep.subr.mxu0 0.0
    %795 = vmatpush1.msra.mxu0 0.0
    %796 = vmatprep.subr.mxu0 0.0
    %797 = vmatpush1.msra.mxu0 0.0
    %798 = vmatprep.subr.mxu0 0.0
    %799 = vmatpush1.msra.mxu0 0.0
    %800 = vmatprep.subr.mxu0 0.0
    %801 = vmatpush1.msra.mxu0 0.0
    %802 = vmatprep.subr.mxu0 0.0
    %803 = vmatpush1.msra.mxu0 0.0
    %804 = vmatprep.subr.mxu0 0.0
    %805 = vmatpush1.msra.mxu0 0.0
    %806 = vmatprep.subr.mxu0 0.0
    %807 = vmatpush1.msra.mxu0 0.0
    %808 = vmatprep.subr.mxu0 0.0
    %809 = vmatpush1.msra.mxu0 0.0
    %810 = vmatprep.subr.mxu0 %v483
    %811 = vmatpush1.msra.mxu0 %v482
    %812 = vmatprep.subr.mxu0 %v481
    %813 = vmatpush1.msra.mxu0 %v480
    %814 = vmatprep.subr.mxu0 0.0
    %815 = vmatpush2.msra.mxu0 0.0
    %816 = vmatprep.subr.mxu0 0.0
    %817 = vmatpush2.msra.mxu0 0.0
    %818 = vmatprep.subr.mxu0 0.0
    %819 = vmatpush2.msra.mxu0 0.0
    %820 = vmatprep.subr.mxu0 0.0
    %821 = vmatpush2.msra.mxu0 0.0
    %822 = vmatprep.subr.mxu0 0.0
    %823 = vmatpush2.msra.mxu0 0.0
    %824 = vmatprep.subr.mxu0 0.0
    %825 = vmatpush2.msra.mxu0 0.0
    %826 = vmatprep.subr.mxu0 0.0
    %827 = vmatpush2.msra.mxu0 0.0
    %828 = vmatprep.subr.mxu0 0.0
    %829 = vmatpush2.msra.mxu0 0.0
    %830 = vmatprep.subr.mxu0 0.0
    %831 = vmatpush2.msra.mxu0 0.0
    %832 = vmatprep.subr.mxu0 0.0
    %833 = vmatpush2.msra.mxu0 0.0
    %834 = vmatprep.subr.mxu0 0.0
    %835 = vmatpush2.msra.mxu0 0.0
    %836 = vmatprep.subr.mxu0 0.0
    %837 = vmatpush2.msra.mxu0 0.0
    %838 = vmatprep.subr.mxu0 0.0
    %839 = vmatpush2.msra.mxu0 0.0
    %840 = vmatprep.subr.mxu0 0.0
    %841 = vmatpush2.msra.mxu0 0.0
    %842 = vmatprep.subr.mxu0 0.0
    %843 = vmatpush2.msra.mxu0 0.0
    %844 = vmatprep.subr.mxu0 0.0
    %845 = vmatpush2.msra.mxu0 0.0
    %846 = vmatprep.mubr.f32.mxu0 0.0
    %847 = vmatmul.mubr.f32.gmra.mxu0 %v771
    %v848 = vpop.f32.mrf.mxu0
    %v849 = vadd.f32 0.0, %v848
    %v850 = vpop.f32.mrf.mxu0
    %v851 = vadd.f32 0.0, %v850
    %852 = vmatprep.mubr.f32.mxu0 0.0
    %853 = vmatmul.mubr.f32.gmra.mxu0 %v774
    %v854 = vpop.f32.mrf.mxu0
    %v855 = vadd.f32 0.0, %v854
    %v856 = vpop.f32.mrf.mxu0
    %v857 = vadd.f32 0.0, %v856
    %858 = vmatprep.mubr.f32.mxu0 0.0
    %859 = vmatmul.mubr.f32.gmra.mxu0 %v777
    %v860 = vpop.f32.mrf.mxu0
    %v861 = vadd.f32 0.0, %v860
    %v862 = vpop.f32.mrf.mxu0
    %v863 = vadd.f32 0.0, %v862
    %864 = vmatprep.mubr.f32.mxu0 0.0
    %865 = vmatmul.mubr.f32.gmra.mxu0 %v780
    %v866 = vpop.f32.mrf.mxu0
    %v867 = vadd.f32 0.0, %v866
    %v868 = vpop.f32.mrf.mxu0
    %v869 = vadd.f32 0.0, %v868
    %870 = vdwg.mxu0
    %v871 = vmul.f32 %v458, %v849
    %v872 = vmul.f32 %v460, %v851
    %v873 = vmul.f32 %v464, %v855
    %v874 = vmul.f32 %v466, %v857
    %v875 = vmul.f32 %v470, %v861
    %v876 = vmul.f32 %v472, %v863
    %v877 = vmul.f32 %v476, %v867
    %v878 = vmul.f32 %v478, %v869
    %v879 = vmax.f32 %v40, %v42
    %v880 = vmax.f32 %v41, %v43
    %v881 = vmax.f32 %v44, %v46
    %v882 = vmax.f32 %v45, %v47
    %v883 = vld [vmem:[#allocation5 + $0xb0] sm:$0xff]
    %v884 = vld [vmem:[#allocation5 + $0xc0] sm:$0xff]
    %v885 = vld [vmem:[#allocation5 + $0xd0] sm:$0xff]
    %v886 = vld [vmem:[#allocation5 + $0xe0] sm:$0xff]
    %v888 = vsel %vm104, %v883, 0
    %v891 = vsel %vm104, %v884, 0
    %v894 = vsel %vm104, %v885, 0
    %v897 = vsel %vm104, %v886, 0
    %899 = vmatprep.subr.mxu0 0.0
    %900 = vmatpush1.msra.mxu0 0.0
    %901 = vmatprep.subr.mxu0 0.0
    %902 = vmatpush1.msra.mxu0 0.0
    %903 = vmatprep.subr.mxu0 0.0
    %904 = vmatpush1.msra.mxu0 0.0
    %905 = vmatprep.subr.mxu0 0.0
    %906 = vmatpush1.msra.mxu0 0.0
    %907 = vmatprep.subr.mxu0 0.0
    %908 = vmatpush1.msra.mxu0 0.0
    %909 = vmatprep.subr.mxu0 0.0
    %910 = vmatpush1.msra.mxu0 0.0
    %911 = vmatprep.subr.mxu0 0.0
    %912 = vmatpush1.msra.mxu0 0.0
    %913 = vmatprep.subr.mxu0 0.0
    %914 = vmatpush1.msra.mxu0 0.0
    %915 = vmatprep.subr.mxu0 0.0
    %916 = vmatpush1.msra.mxu0 0.0
    %917 = vmatprep.subr.mxu0 0.0
    %918 = vmatpush1.msra.mxu0 0.0
    %919 = vmatprep.subr.mxu0 0.0
    %920 = vmatpush1.msra.mxu0 0.0
    %921 = vmatprep.subr.mxu0 0.0
    %922 = vmatpush1.msra.mxu0 0.0
    %923 = vmatprep.subr.mxu0 0.0
    %924 = vmatpush1.msra.mxu0 0.0
    %925 = vmatprep.subr.mxu0 0.0
    %926 = vmatpush1.msra.mxu0 0.0
    %927 = vmatprep.subr.mxu0 %v882
    %928 = vmatpush1.msra.mxu0 %v881
    %929 = vmatprep.subr.mxu0 %v880
    %930 = vmatpush1.msra.mxu0 %v879
    %931 = vmatprep.subr.mxu0 0.0
    %932 = vmatpush2.msra.mxu0 0.0
    %933 = vmatprep.subr.mxu0 0.0
    %934 = vmatpush2.msra.mxu0 0.0
    %935 = vmatprep.subr.mxu0 0.0
    %936 = vmatpush2.msra.mxu0 0.0
    %937 = vmatprep.subr.mxu0 0.0
    %938 = vmatpush2.msra.mxu0 0.0
    %939 = vmatprep.subr.mxu0 0.0
    %940 = vmatpush2.msra.mxu0 0.0
    %941 = vmatprep.subr.mxu0 0.0
    %942 = vmatpush2.msra.mxu0 0.0
    %943 = vmatprep.subr.mxu0 0.0
    %944 = vmatpush2.msra.mxu0 0.0
    %945 = vmatprep.subr.mxu0 0.0
    %946 = vmatpush2.msra.mxu0 0.0
    %947 = vmatprep.subr.mxu0 0.0
    %948 = vmatpush2.msra.mxu0 0.0
    %949 = vmatprep.subr.mxu0 0.0
    %950 = vmatpush2.msra.mxu0 0.0
    %951 = vmatprep.subr.mxu0 0.0
    %952 = vmatpush2.msra.mxu0 0.0
    %953 = vmatprep.subr.mxu0 0.0
    %954 = vmatpush2.msra.mxu0 0.0
    %955 = vmatprep.subr.mxu0 0.0
    %956 = vmatpush2.msra.mxu0 0.0
    %957 = vmatprep.subr.mxu0 0.0
    %958 = vmatpush2.msra.mxu0 0.0
    %959 = vmatprep.subr.mxu0 0.0
    %960 = vmatpush2.msra.mxu0 0.0
    %961 = vmatprep.subr.mxu0 0.0
    %962 = vmatpush2.msra.mxu0 0.0
    %963 = vmatprep.mubr.f32.mxu0 0.0
    %964 = vmatmul.mubr.f32.gmra.mxu0 %v888
    %v965 = vpop.f32.mrf.mxu0
    %v966 = vadd.f32 0.0, %v965
    %v967 = vpop.f32.mrf.mxu0
    %v968 = vadd.f32 0.0, %v967
    %969 = vmatprep.mubr.f32.mxu0 0.0
    %970 = vmatmul.mubr.f32.gmra.mxu0 %v891
    %v971 = vpop.f32.mrf.mxu0
    %v972 = vadd.f32 0.0, %v971
    %v973 = vpop.f32.mrf.mxu0
    %v974 = vadd.f32 0.0, %v973
    %975 = vmatprep.mubr.f32.mxu0 0.0
    %976 = vmatmul.mubr.f32.gmra.mxu0 %v894
    %v977 = vpop.f32.mrf.mxu0
    %v978 = vadd.f32 0.0, %v977
    %v979 = vpop.f32.mrf.mxu0
    %v980 = vadd.f32 0.0, %v979
    %981 = vmatprep.mubr.f32.mxu0 0.0
    %982 = vmatmul.mubr.f32.gmra.mxu0 %v897
    %v983 = vpop.f32.mrf.mxu0
    %v984 = vadd.f32 0.0, %v983
    %v985 = vpop.f32.mrf.mxu0
    %v986 = vadd.f32 0.0, %v985
    %987 = vdwg.mxu0
    %v988 = vadd.f32 %v871, %v966
    %v989 = vadd.f32 %v872, %v968
    %v990 = vadd.f32 %v873, %v972
    %v991 = vadd.f32 %v874, %v974
    %v992 = vadd.f32 %v875, %v978
    %v993 = vadd.f32 %v876, %v980
    %v994 = vadd.f32 %v877, %v984
    %v995 = vadd.f32 %v878, %v986
    %996 = vst [vmem:[#allocation7] sm:$0xff] %v988
    %997 = vst [vmem:[#allocation7 + $0x8] sm:$0xff] %v989
    %998 = vst [vmem:[#allocation7 + $0x10] sm:$0xff] %v990
    %999 = vst [vmem:[#allocation7 + $0x18] sm:$0xff] %v991
    %1000 = vst [vmem:[#allocation7 + $0x20] sm:$0xff] %v992
    %1001 = vst [vmem:[#allocation7 + $0x28] sm:$0xff] %v993
    %1002 = vst [vmem:[#allocation7 + $0x30] sm:$0xff] %v994
    %1003 = vst [vmem:[#allocation7 + $0x38] sm:$0xff] %v995
    // Predicated region
    $region18: #{tpu_custom_call.1} parent=1 // pred_check
      _
    $region19: #{tpu_custom_call.1} parent=1 // pred_check_branch
      %1005 = sbr.rel (0) target = $region21
    $region20: #{tpu_custom_call.1} parent=1 // pred_region
      %s1007 = ssub.s32 1024, 1024
      %1008 = vsyncadd [#allocation4], %s1007
      %s1009 = sshll.u32 [#allocation7], 4
      %s1010 = int_to_ptr.vmem [resolvable:$true] %s1009
      %1015 = dma.vmem_to_hbm [thread:$0]  %s1010, 1024, %s2, [#allocation4], 256, 256, 16
    $region21: #{tpu_custom_call.1} parent=1 // pred_fallthru
      _
    // Predicated region
    $region22: #{tpu_custom_call.1} parent=1 // pred_check
      _
    $region23: #{tpu_custom_call.1} parent=1 // pred_check_branch
      %1017 = sbr.rel (0) target = $region25
    $region24: #{tpu_custom_call.1} parent=1 // pred_region
      %1018 = dma.done [#allocation4], 1024
    $region25: #{tpu_custom_call.1} parent=1 // pred_fallthru
      _
    %1019 = vsyncpa [#allocation3], 1
    %1020 = vsyncpa [#allocation6], 1
    %1021 = vsyncpa [#allocation4], 1

</llo_original>
